<compile_context>
chip_gen: v7x
topology: tpu7x:2x2x1
jax: 0.10.0
libtpu: 0.0.40
codegen_flags: <defaults>
</compile_context>

<pallas_src>
import functools

import jax
import jax.numpy as jnp
from jax import lax
from jax.experimental import pallas as pl
from jax.experimental.pallas import tpu as pltpu

_NEG = -1e30  # finite "minus infinity" used to clamp out-of-vocab lanes


def _genmodel_ce_kernel(tgt_ref, mask_ref, logits_ref, out_ref,
                        m_sc, s_sc, p_sc, *, v_total, needs_lane_clamp):
    """One (token_tile, vocab_tile) grid step of masked token cross-entropy."""
    v_idx = pl.program_id(1)
    n_v = pl.num_programs(1)

    @pl.when(v_idx == 0)
    def _init():
        m_sc[...] = jnp.full_like(m_sc, -jnp.inf)
        s_sc[...] = jnp.zeros_like(s_sc)
        p_sc[...] = jnp.zeros_like(p_sc)

    logits = logits_ref[...].astype(jnp.float32)              # [TT, VT] f32
    tt, vt = logits.shape
    lane0 = lax.broadcasted_iota(jnp.int32, (tt, vt), 1)       # 0..vt-1 per row

    if needs_lane_clamp:
        # Partial last vocab tile (V % vt != 0): lanes past V hold UNSPECIFIED
        # data (possibly NaN/Inf) -- clamp before they can reach max/exp/pick.
        # This branch is statically removed when V divides evenly.
        limit = v_total - v_idx * vt                           # scalar; >= vt except last tile
        logits = jnp.where(lane0 < limit, logits, _NEG)

    # Fused target-logit pick; the vocab-tile offset lives on the (tt,1) side
    # (one cheap per-row subtract) instead of a full-tile iota add.
    # NOTE: target ids outside [0, V) silently yield p=0 (inputs are trusted).
    tgt_local = tgt_ref[...] - v_idx * vt                      # [TT, 1] int32
    p_sc[...] += jnp.sum(jnp.where(lane0 == tgt_local, logits, 0.0),
                         axis=-1, keepdims=True)

    # Online log-sum-exp across vocab tiles (f32 accumulation).
    m_prev = m_sc[...]
    m_new = jnp.maximum(m_prev, jnp.max(logits, axis=-1, keepdims=True))
    s_sc[...] = (s_sc[...] * jnp.exp(m_prev - m_new)
                 + jnp.sum(jnp.exp(logits - m_new), axis=-1, keepdims=True))
    m_sc[...] = m_new

    @pl.when(v_idx == n_v - 1)
    def _finalize():
        nll = (m_sc[...] + jnp.log(s_sc[...])) - p_sc[...]     # per-token NLL
        # where() (not a multiply) so NaN garbage in out-of-range token rows
        # (mask == 0) is dropped rather than propagated.
        out_ref[...] = jnp.where(mask_ref[...] > 0.0, nll, 0.0)
        # NOTE: the (tt,1) output lowers to narrow masked stores, but total
        # write volume is only N*4 bytes; a lane-dense transposed output was
        # judged not worth the in-kernel relayout risk.


def gen_model_loss(logits, target, length, *, token_tile=512, vocab_tile=None):
    """Pallas equivalent of GenModel.forward(input, target, length).

    logits: [B, T-1, V] (f32 or bf16), target: [B, T] int, length: [B] int
    (number of valid shifted targets per batch row).
    Returns masked-mean token cross-entropy (scalar f32).
    """
    B, Tm1, V = logits.shape
    N = B * Tm1
    itemsize = jnp.dtype(logits.dtype).itemsize

    # ---- tile selection -----------------------------------------------------
    # Vocab tile: fixed (~4 MiB logits tile), independent of V's factorization;
    # the ragged tail is masked in-kernel instead of padding logits in HBM.
    if vocab_tile is None:
        vocab_tile = 2048 if itemsize >= 4 else 4096
    vocab_tile = max(128, (vocab_tile // 128) * 128)
    vt = V if V <= vocab_tile else vocab_tile

    # Token tile: 512 by default, shrunk so the "parallel" token axis has at
    # least two tiles (v7x has 2 TensorCores per chip).
    tt = max(8, (token_tile // 8) * 8)
    if N < 2 * tt:
        tt = max(8, min(tt, pl.cdiv(pl.cdiv(N, 2), 8) * 8))

    n_tok_tiles = pl.cdiv(N, tt)
    n_voc_tiles = pl.cdiv(V, vt)
    n_pad = n_tok_tiles * tt

    # ---- cheap JAX glue (O(N) work only; the [N, V] logits are never copied) --
    eff_tgt = target[:, 1:].astype(jnp.int32).reshape(N, 1)                 # [N, 1]
    t_pos = jnp.arange(Tm1, dtype=jnp.int32)[None, :]
    mask = (t_pos < length.astype(jnp.int32)[:, None]).astype(jnp.float32)
    mask = mask.reshape(N, 1)                                               # [N, 1]
    count = jnp.maximum(jnp.sum(mask), 1.0)          # guard all-masked batches

    if n_pad != N:                       # pad only the tiny [N,1] side arrays
        eff_tgt = jnp.pad(eff_tgt, ((0, n_pad - N), (0, 0)))
        mask = jnp.pad(mask, ((0, n_pad - N), (0, 0)))

    x = logits.reshape(N, V)

    kernel = functools.partial(
        _genmodel_ce_kernel, v_total=V, needs_lane_clamp=(V % vt != 0))

    cost = pl.CostEstimate(
        flops=int(6 * N * V),
        transcendentals=int(N * V),
        bytes_accessed=int(N * V * itemsize + n_pad * 16),
    )

    out = pl.pallas_call(
        kernel,
        out_shape=jax.ShapeDtypeStruct((n_pad, 1), jnp.float32),
        grid_spec=pltpu.PrefetchScalarGridSpec(
            num_scalar_prefetch=0,
            grid=(n_tok_tiles, n_voc_tiles),
            in_specs=[
                pl.BlockSpec((tt, 1), lambda i, v: (i, 0)),     # targets
                pl.BlockSpec((tt, 1), lambda i, v: (i, 0)),     # mask
                # v7x knob: pipeline_mode=pl.Buffered(3) on this spec hides DMA
                # issue latency if the 2-deep default shows exposed DMA; left at
                # the default for portability.
                pl.BlockSpec((tt, vt), lambda i, v: (i, v)),    # logits
            ],
            out_specs=pl.BlockSpec((tt, 1), lambda i, v: (i, 0)),
            scratch_shapes=[pltpu.VMEM((tt, 1), jnp.float32)] * 3,
        ),
        compiler_params=pltpu.CompilerParams(
            dimension_semantics=("parallel", "arbitrary"),
            vmem_limit_bytes=48 * 1024 * 1024,   # <= v7x's 64 MiB phys with headroom
        ),
        cost_estimate=cost,
    )(eff_tgt, mask, x)

    masked_sum = jnp.sum(out)            # padded / masked rows contribute 0
    return masked_sum / count


def _reference(logits, target, length):
    B, Tm1, V = logits.shape
    eff = target[:, 1:]
    logp = jax.nn.log_softmax(logits.astype(jnp.float32), axis=-1)
    ce = -jnp.take_along_axis(logp, eff[..., None], axis=-1)[..., 0]
    mask = jnp.arange(Tm1)[None, :] < length[:, None]
    return jnp.sum(jnp.where(mask, ce, 0.0)) / jnp.maximum(jnp.sum(mask), 1)


if __name__ == "__main__":
    key = jax.random.PRNGKey(0)
    k1, k2, k3, k4, k5, k6, k7, k8 = jax.random.split(key, 8)

    # Case 1: small single-vocab-tile demo.
    B, T, V = 2, 9, 128
    logits = jax.random.normal(k1, (B, T - 1, V), dtype=jnp.float32)
    target = jax.random.randint(k2, (B, T), 0, V, dtype=jnp.int32)
    length = jnp.array([5, 8], dtype=jnp.int32)
    loss = jax.block_until_ready(gen_model_loss(logits, target, length))
    ref = _reference(logits, target, length)
    assert jnp.allclose(loss, ref, atol=1e-4, rtol=1e-5), (loss, ref)

    # Case 2: multi-tile vocab (aligned) + multi-tile tokens -> exercises the
    # online LSE, scalar-side target-pick offset, and the parallel token axis.
    B2, T2, V2 = 2, 9, 384
    logits2 = jax.random.normal(k3, (B2, T2 - 1, V2), dtype=jnp.float32)
    target2 = jax.random.randint(k4, (B2, T2), 0, V2, dtype=jnp.int32)
    length2 = jnp.array([8, 3], dtype=jnp.int32)
    loss2 = jax.block_until_ready(
        gen_model_loss(logits2, target2, length2, token_tile=8, vocab_tile=128))
    ref2 = _reference(logits2, target2, length2)
    assert jnp.allclose(loss2, ref2, atol=1e-4, rtol=1e-5), (loss2, ref2)

    # Case 3: ragged N and V with bf16 logits -> exercises the in-kernel lane
    # clamp (V % vt != 0) and the garbage-row guard (N % tt != 0), no logits pad.
    B3, T3, V3 = 3, 6, 200
    logits3 = jax.random.normal(k5, (B3, T3 - 1, V3), dtype=jnp.float32)
    target3 = jax.random.randint(k6, (B3, T3), 0, V3, dtype=jnp.int32)
    length3 = jnp.array([5, 2, 4], dtype=jnp.int32)
    loss3 = jax.block_until_ready(
        gen_model_loss(logits3.astype(jnp.bfloat16), target3, length3,
                       vocab_tile=128))
    ref3 = _reference(logits3.astype(jnp.bfloat16).astype(jnp.float32),
                      target3, length3)
    assert jnp.allclose(loss3, ref3, atol=2e-3, rtol=2e-3), (loss3, ref3)

    # Case 4: default tile policy (vt=2048) with a ragged vocab tail and a
    # zero-length batch row -> exercises the production code path.
    B4, T4, V4 = 4, 33, 2500
    logits4 = jax.random.normal(k7, (B4, T4 - 1, V4), dtype=jnp.float32)
    target4 = jax.random.randint(k8, (B4, T4), 0, V4, dtype=jnp.int32)
    length4 = jnp.array([32, 10, 0, 20], dtype=jnp.int32)
    loss4 = jax.block_until_ready(gen_model_loss(logits4, target4, length4))
    ref4 = _reference(logits4, target4, length4)
    assert jnp.allclose(loss4, ref4, atol=1e-4, rtol=1e-4), (loss4, ref4)

    print("KERNEL_OK")
</pallas_src>

<mosaic_0001>
module attributes {stable_mosaic.version = 11 : i64} {
  func.func @_genmodel_ce_kernel(%arg0: i32, %arg1: i32, %arg2: memref<8x1xi32, #tpu.memory_space<vmem>>, %arg3: memref<8x1xf32, #tpu.memory_space<vmem>>, %arg4: memref<8x128xf32, #tpu.memory_space<vmem>>, %arg5: memref<8x1xf32, #tpu.memory_space<vmem>>, %arg6: memref<8x1xf32, #tpu.memory_space<vmem>>, %arg7: memref<8x1xf32, #tpu.memory_space<vmem>>, %arg8: memref<8x1xf32, #tpu.memory_space<vmem>>) attributes {dimension_semantics = [#tpu.dimension_semantics<parallel>, #tpu.dimension_semantics<arbitrary>], iteration_bounds = array<i64: 2, 1>, scalar_prefetch = 0 : i64, scratch_operands = 3 : i64, tpu.core_type = #tpu.core_type<tc>, window_params = [{transform_indices = @transform_0, window_bounds = array<i64: 8, 1>}, {transform_indices = @transform_1, window_bounds = array<i64: 8, 1>}, {transform_indices = @transform_2, window_bounds = array<i64: 8, 128>}, {transform_indices = @transform_3, window_bounds = array<i64: 8, 1>}]} {
    %c0_i32 = arith.constant 0 : i32
    %0 = arith.cmpi eq, %arg1, %c0_i32 : i32
    %1 = arith.extui %0 : i1 to i32
    %c0_i32_0 = arith.constant 0 : i32
    %2 = arith.cmpi ne, %1, %c0_i32_0 : i32
    scf.if %2 {
      %cst_21 = arith.constant 0xFF800000 : f32
      %37 = vector.broadcast %cst_21 : f32 to vector<8x1xf32>
      %c0_22 = arith.constant 0 : index
      %c0_23 = arith.constant 0 : index
      %38 = vector.load %arg6[%c0_22, %c0_23] : memref<8x1xf32, #tpu.memory_space<vmem>>, vector<8x1xf32>
      tpu.vector_store %arg6[%c0_22, %c0_23], %37 {strides = array<i32>} : memref<8x1xf32, #tpu.memory_space<vmem>>, vector<8x1xf32>,
      %cst_24 = arith.constant 0.000000e+00 : f32
      %39 = vector.broadcast %cst_24 : f32 to vector<8x1xf32>
      %c0_25 = arith.constant 0 : index
      %c0_26 = arith.constant 0 : index
      %40 = vector.load %arg7[%c0_25, %c0_26] : memref<8x1xf32, #tpu.memory_space<vmem>>, vector<8x1xf32>
      tpu.vector_store %arg7[%c0_25, %c0_26], %39 {strides = array<i32>} : memref<8x1xf32, #tpu.memory_space<vmem>>, vector<8x1xf32>,
      %cst_27 = arith.constant 0.000000e+00 : f32
      %41 = vector.broadcast %cst_27 : f32 to vector<8x1xf32>
      %c0_28 = arith.constant 0 : index
      %c0_29 = arith.constant 0 : index
      %42 = vector.load %arg8[%c0_28, %c0_29] : memref<8x1xf32, #tpu.memory_space<vmem>>, vector<8x1xf32>
      tpu.vector_store %arg8[%c0_28, %c0_29], %41 {strides = array<i32>} : memref<8x1xf32, #tpu.memory_space<vmem>>, vector<8x1xf32>,
    } else {
    }
    %c0 = arith.constant 0 : index
    %c0_1 = arith.constant 0 : index
    %3 = vector.load %arg4[%c0, %c0_1] : memref<8x128xf32, #tpu.memory_space<vmem>>, vector<8x128xf32>
    %4 = tpu.iota {dimensions = array<i32: 1>} : vector<8x128xi32>
    %c0_2 = arith.constant 0 : index
    %c0_3 = arith.constant 0 : index
    %5 = vector.load %arg2[%c0_2, %c0_3] : memref<8x1xi32, #tpu.memory_space<vmem>>, vector<8x1xi32>
    %c128_i32 = arith.constant 128 : i32
    %6 = arith.muli %arg1, %c128_i32 : i32
    %7 = vector.broadcast %6 : i32 to vector<8x1xi32>
    %8 = arith.subi %5, %7 : vector<8x1xi32>
    %c0_4 = arith.constant 0 : index
    %c0_5 = arith.constant 0 : index
    %9 = vector.load %arg8[%c0_4, %c0_5] : memref<8x1xf32, #tpu.memory_space<vmem>>, vector<8x1xf32>
    %10 = vector.broadcast %8 : vector<8x1xi32> to vector<8x128xi32>
    %11 = arith.cmpi eq, %4, %10 : vector<8x128xi32>
    %cst = arith.constant 0.000000e+00 : f32
    %12 = vector.broadcast %cst : f32 to vector<8x128xf32>
    %13 = arith.select %11, %3, %12 : vector<8x128xi1>, vector<8x128xf32>
    %cst_6 = arith.constant dense<0.000000e+00> : vector<8xf32>
    %14 = vector.multi_reduction <add>, %13, %cst_6 [1] : vector<8x128xf32> to vector<8xf32>
    %15 = vector.shape_cast %14 : vector<8xf32> to vector<8x1xf32>
    %16 = arith.addf %9, %15 : vector<8x1xf32>
    %c0_7 = arith.constant 0 : index
    %c0_8 = arith.constant 0 : index
    %17 = vector.load %arg8[%c0_7, %c0_8] : memref<8x1xf32, #tpu.memory_space<vmem>>, vector<8x1xf32>
    tpu.vector_store %arg8[%c0_7, %c0_8], %16 {strides = array<i32>} : memref<8x1xf32, #tpu.memory_space<vmem>>, vector<8x1xf32>,
    %c0_9 = arith.constant 0 : index
    %c0_10 = arith.constant 0 : index
    %18 = vector.load %arg6[%c0_9, %c0_10] : memref<8x1xf32, #tpu.memory_space<vmem>>, vector<8x1xf32>
    %cst_11 = arith.constant dense<0xFF800000> : vector<8xf32>
    %19 = vector.multi_reduction <maximumf>, %3, %cst_11 [1] : vector<8x128xf32> to vector<8xf32>
    %20 = vector.shape_cast %19 : vector<8xf32> to vector<8x1xf32>
    %21 = arith.maximumf %18, %20 : vector<8x1xf32>
    %c0_12 = arith.constant 0 : index
    %c0_13 = arith.constant 0 : index
    %22 = vector.load %arg7[%c0_12, %c0_13] : memref<8x1xf32, #tpu.memory_space<vmem>>, vector<8x1xf32>
    %23 = arith.subf %18, %21 : vector<8x1xf32>
    %24 = math.exp %23 : vector<8x1xf32>
    %25 = arith.mulf %22, %24 : vector<8x1xf32>
    %26 = vector.broadcast %21 : vector<8x1xf32> to vector<8x128xf32>
    %27 = arith.subf %3, %26 : vector<8x128xf32>
    %28 = math.exp %27 : vector<8x128xf32>
    %cst_14 = arith.constant dense<0.000000e+00> : vector<8xf32>
    %29 = vector.multi_reduction <add>, %28, %cst_14 [1] : vector<8x128xf32> to vector<8xf32>
    %30 = vector.shape_cast %29 : vector<8xf32> to vector<8x1xf32>
    %31 = arith.addf %25, %30 : vector<8x1xf32>
    %c0_15 = arith.constant 0 : index
    %c0_16 = arith.constant 0 : index
    %32 = vector.load %arg7[%c0_15, %c0_16] : memref<8x1xf32, #tpu.memory_space<vmem>>, vector<8x1xf32>
    tpu.vector_store %arg7[%c0_15, %c0_16], %31 {strides = array<i32>} : memref<8x1xf32, #tpu.memory_space<vmem>>, vector<8x1xf32>,
    %c0_17 = arith.constant 0 : index
    %c0_18 = arith.constant 0 : index
    %33 = vector.load %arg6[%c0_17, %c0_18] : memref<8x1xf32, #tpu.memory_space<vmem>>, vector<8x1xf32>
    tpu.vector_store %arg6[%c0_17, %c0_18], %21 {strides = array<i32>} : memref<8x1xf32, #tpu.memory_space<vmem>>, vector<8x1xf32>,
    %c0_i32_19 = arith.constant 0 : i32
    %34 = arith.cmpi eq, %arg1, %c0_i32_19 : i32
    %35 = arith.extui %34 : i1 to i32
    %c0_i32_20 = arith.constant 0 : i32
    %36 = arith.cmpi ne, %35, %c0_i32_20 : i32
    scf.if %36 {
      %c0_21 = arith.constant 0 : index
      %c0_22 = arith.constant 0 : index
      %37 = vector.load %arg6[%c0_21, %c0_22] : memref<8x1xf32, #tpu.memory_space<vmem>>, vector<8x1xf32>
      %c0_23 = arith.constant 0 : index
      %c0_24 = arith.constant 0 : index
      %38 = vector.load %arg7[%c0_23, %c0_24] : memref<8x1xf32, #tpu.memory_space<vmem>>, vector<8x1xf32>
      %39 = math.log %38 : vector<8x1xf32>
      %40 = arith.addf %37, %39 : vector<8x1xf32>
      %c0_25 = arith.constant 0 : index
      %c0_26 = arith.constant 0 : index
      %41 = vector.load %arg8[%c0_25, %c0_26] : memref<8x1xf32, #tpu.memory_space<vmem>>, vector<8x1xf32>
      %42 = arith.subf %40, %41 : vector<8x1xf32>
      %c0_27 = arith.constant 0 : index
      %c0_28 = arith.constant 0 : index
      %43 = vector.load %arg3[%c0_27, %c0_28] : memref<8x1xf32, #tpu.memory_space<vmem>>, vector<8x1xf32>
      %cst_29 = arith.constant 0.000000e+00 : f32
      %44 = vector.broadcast %cst_29 : f32 to vector<8x1xf32>
      %45 = arith.cmpf ogt, %43, %44 : vector<8x1xf32>
      %cst_30 = arith.constant 0.000000e+00 : f32
      %46 = vector.broadcast %cst_30 : f32 to vector<8x1xf32>
      %47 = arith.select %45, %42, %46 : vector<8x1xi1>, vector<8x1xf32>
      %c0_31 = arith.constant 0 : index
      %c0_32 = arith.constant 0 : index
      %48 = vector.load %arg5[%c0_31, %c0_32] : memref<8x1xf32, #tpu.memory_space<vmem>>, vector<8x1xf32>
      tpu.vector_store %arg5[%c0_31, %c0_32], %47 {strides = array<i32>} : memref<8x1xf32, #tpu.memory_space<vmem>>, vector<8x1xf32>,
    } else {
    }
    return
  }
  func.func @transform_0(%arg0: i32, %arg1: i32) -> (i32, i32) {
    %c0_i32 = arith.constant 0 : i32
    %c0_i32_0 = arith.constant 0 : i32
    return %arg0, %c0_i32 : i32, i32
  }
  func.func @transform_1(%arg0: i32, %arg1: i32) -> (i32, i32) {
    %c0_i32 = arith.constant 0 : i32
    %c0_i32_0 = arith.constant 0 : i32
    return %arg0, %c0_i32 : i32, i32
  }
  func.func @transform_2(%arg0: i32, %arg1: i32) -> (i32, i32) {
    %c0_i32 = arith.constant 0 : i32
    return %arg0, %arg1 : i32, i32
  }
  func.func @transform_3(%arg0: i32, %arg1: i32) -> (i32, i32) {
    %c0_i32 = arith.constant 0 : i32
    %c0_i32_0 = arith.constant 0 : i32
    return %arg0, %c0_i32 : i32, i32
  }
}

</mosaic_0001>

<llo_original>
// kernel: tpu_custom_call.1
$region0: #{tpu_custom_call.1}
  #allocation0 [shape = 'u32[]', space=smem, size = 0x4, offset = 0x4, fixed_abs, tag = 'smem constant byte address 0x4 - core index']
  #allocation1 [shape = 'u32[144,128]{1,0:T(1,128)}', space=vmem, size = 0x12000, scoped, tag = 'internal scratch']
  #allocation2 [shape = 'f32[8,1]{1,0:T(8,128)}', space=vmem, size = 0x1000, scoped, tag = 'scratch operand']
  #allocation3 [shape = 'f32[8,1]{1,0:T(8,128)}', space=vmem, size = 0x1000, scoped, tag = 'scratch operand']
  #allocation4 [shape = 'f32[8,1]{1,0:T(8,128)}', space=vmem, size = 0x1000, scoped, tag = 'scratch operand']
  %s0 = inlined_call_operand.vmem [shape: s32[16,1], index: 0, kind: input, shape index: {}]
  %s1 = inlined_call_operand.vmem [shape: f32[16,1], index: 1, kind: input, shape index: {}]
  %s2 = inlined_call_operand.vmem [shape: f32[16,128], index: 2, kind: input, shape index: {}]
  %s3 = inlined_call_operand.vmem [shape: f32[16,1], index: 3, kind: output, shape index: {}]
  %s4 = sld [smem:[#allocation0]]
  $region53: #{tpu_custom_call.1} parent=0
    _
  %s6 = ssub.s32 1, %s4
  %s7 = scalar_select 0, %s6, %s4
  loop: start=0, step=1, limit=4
  $region2: #{tpu_custom_call.1} parent=0 // loop_pre_header
    _
  $region3: #{tpu_custom_call.1} parent=0 // loop_header
    %s9 = sphi 0, %s13
    %p10 = scmp.ge.s32.totalorder %s9, 4
    %s16 = sphi 0, %s28
    %s17 = sphi 0, %s24
    %s18 = sphi 0, %s16
    %s19 = sphi 0, %s17
    %s20 = sphi 0, %s18
    %s21 = sphi 0, %s19
    %s31 = sphi 0, %s33
    %s34 = sphi 0, %s31
    %s35 = sphi 0, %s34
    %s51 = sphi 0, %s35
    %s57 = sphi 0, %s59
    %s60 = sphi 0, %s57
    %s61 = sphi 0, %s60
    %s77 = sphi 0, %s61
    %s85 = sphi 0, %s87
    %s88 = sphi 0, %s85
    %s89 = sphi 0, %s88
    %s105 = sphi 0, %s89
    %s111 = sphi 0, %s113
    %s114 = sphi 0, %s111
    %s115 = sphi 0, %s114
    %s131 = sphi 0, %s115
  $region4: #{tpu_custom_call.1} parent=0 // loop_header_branch
    %12 = sbr.rel (%p10) target = $region8
  $region5: #{tpu_custom_call.1} parent=0 // loop_body
    %s14 = ssub.s32 %s9, 1
    %s15 = ssub.s32 %s9, 2
    %s22 = sadd.s32 1, %s17
    %p23 = scmp.ge.s32.totalorder %s22, 1
    %s24 = scalar_select %p23, 0, %s22
    %s25 = sadd.s32 1, %s16
    %s26 = scalar_select %p23, %s25, %s16
    %p27 = scmp.ge.s32.totalorder %s26, 2
    %s28 = scalar_select %p27, 0, %s26
    %s29 = ssub.s32 %s16, %s28
    %p30 = scmp.eq.s32.totalorder %s29, 0
    %s32 = sadd.s32 %s31, 1
    %s33 = scalar_select %p30, %s31, %s32
    %p36 = pneg %p30
    %p37 = scmp.eq.s32.totalorder %s9, 1
    %p38 = por %p36, %p37
    %p39 = scmp.ne.s32.totalorder %s31, %s34
    %p40 = scmp.eq.s32.totalorder %s9, 0
    %p41 = por %p39, %p40
    %p42 = scmp.ne.s32.totalorder %s31, %s34
    %p43 = scmp.eq.s32.totalorder %s14, 1
    %p44 = por %p42, %p43
    %p45 = scmp.ne.s32.totalorder %s34, %s35
    %p46 = scmp.eq.s32.totalorder %s14, 0
    %p47 = por %p45, %p46
    %p48 = scmp.ne.s32.totalorder %s34, %s35
    %p49 = scmp.eq.s32.totalorder %s15, 1
    %p50 = por %p48, %p49
    %p52 = scmp.ne.s32.totalorder %s35, %s51
    %p53 = scmp.eq.s32.totalorder %s15, 0
    %p54 = por %p52, %p53
    %s55 = ssub.s32 %s16, %s28
    %p56 = scmp.eq.s32.totalorder %s55, 0
    %s58 = sadd.s32 %s57, 1
    %s59 = scalar_select %p56, %s57, %s58
    %p62 = pneg %p56
    %p63 = scmp.eq.s32.totalorder %s9, 1
    %p64 = por %p62, %p63
    %p65 = scmp.ne.s32.totalorder %s57, %s60
    %p66 = scmp.eq.s32.totalorder %s9, 0
    %p67 = por %p65, %p66
    %p68 = scmp.ne.s32.totalorder %s57, %s60
    %p69 = scmp.eq.s32.totalorder %s14, 1
    %p70 = por %p68, %p69
    %p71 = scmp.ne.s32.totalorder %s60, %s61
    %p72 = scmp.eq.s32.totalorder %s14, 0
    %p73 = por %p71, %p72
    %p74 = scmp.ne.s32.totalorder %s60, %s61
    %p75 = scmp.eq.s32.totalorder %s15, 1
    %p76 = por %p74, %p75
    %p78 = scmp.ne.s32.totalorder %s61, %s77
    %p79 = scmp.eq.s32.totalorder %s15, 0
    %p80 = por %p78, %p79
    %s81 = ssub.s32 %s16, %s28
    %s82 = ssub.s32 %s17, %s24
    %s83 = sor.u32 %s81, %s82
    %p84 = scmp.eq.s32.totalorder %s83, 0
    %s86 = sadd.s32 %s85, 1
    %s87 = scalar_select %p84, %s85, %s86
    %p90 = pneg %p84
    %p91 = scmp.eq.s32.totalorder %s9, 1
    %p92 = por %p90, %p91
    %p93 = scmp.ne.s32.totalorder %s85, %s88
    %p94 = scmp.eq.s32.totalorder %s9, 0
    %p95 = por %p93, %p94
    %p96 = scmp.ne.s32.totalorder %s85, %s88
    %p97 = scmp.eq.s32.totalorder %s14, 1
    %p98 = por %p96, %p97
    %p99 = scmp.ne.s32.totalorder %s88, %s89
    %p100 = scmp.eq.s32.totalorder %s14, 0
    %p101 = por %p99, %p100
    %p102 = scmp.ne.s32.totalorder %s88, %s89
    %p103 = scmp.eq.s32.totalorder %s15, 1
    %p104 = por %p102, %p103
    %p106 = scmp.ne.s32.totalorder %s89, %s105
    %p107 = scmp.eq.s32.totalorder %s15, 0
    %p108 = por %p106, %p107
    %s109 = ssub.s32 %s16, %s28
    %p110 = scmp.eq.s32.totalorder %s109, 0
    %s112 = sadd.s32 %s111, 1
    %s113 = scalar_select %p110, %s111, %s112
    %p116 = pneg %p110
    %p117 = scmp.eq.s32.totalorder %s9, 1
    %p118 = por %p116, %p117
    %p119 = scmp.ne.s32.totalorder %s111, %s114
    %p120 = scmp.eq.s32.totalorder %s9, 0
    %p121 = por %p119, %p120
    %p122 = scmp.ne.s32.totalorder %s111, %s114
    %p123 = scmp.eq.s32.totalorder %s14, 1
    %p124 = por %p122, %p123
    %p125 = scmp.ne.s32.totalorder %s114, %s115
    %p126 = scmp.eq.s32.totalorder %s14, 0
    %p127 = por %p125, %p126
    %p128 = scmp.ne.s32.totalorder %s114, %s115
    %p129 = scmp.eq.s32.totalorder %s15, 1
    %p130 = por %p128, %p129
    %p132 = scmp.ne.s32.totalorder %s115, %s131
    %p133 = scmp.eq.s32.totalorder %s15, 0
    %p134 = por %p132, %p133
    %p135 = scmp.le.s32.totalorder 1, %s9
    %p136 = scmp.lt.s32.totalorder %s9, 3
    %p137 = pnand %p135, %p136
    %p138 = pneg %p137
    // Predicated region
    $region9: #{tpu_custom_call.1} parent=5 // pred_check
      _
    $region10: #{tpu_custom_call.1} parent=5 // pred_check_branch
      %140 = sbr.rel (%p137) target = $region12
    $region11: #{tpu_custom_call.1} parent=5 // pred_region
      %s141 = ssub.s32 %s9, 1
    $region12: #{tpu_custom_call.1} parent=5 // pred_fallthru
      _
    %p142 = scmp.lt.s32.totalorder %s9, 2
    // Predicated region
    $region13: #{tpu_custom_call.1} parent=5 // pred_check
      %p143 = pneg %p142
    $region14: #{tpu_custom_call.1} parent=5 // pred_check_branch
      %145 = sbr.rel (%p143) target = $region16
    $region15: #{tpu_custom_call.1} parent=5 // pred_region
      // Predicated region
      $region17: #{tpu_custom_call.1} parent=15 // pred_check
        %p146 = pneg %p41
      $region18: #{tpu_custom_call.1} parent=15 // pred_check_branch
        %148 = sbr.rel (%p146) target = $region20
      $region19: #{tpu_custom_call.1} parent=15 // pred_region
        %p149 = scmp.lt.s32.totalorder %s16, 1
        %s150 = scalar_select %p149, %s16, 1
        %s151 = smul.addr %s150, 8
        %s152 = scalar_lea.vmem %s0, %s151
      $region20: #{tpu_custom_call.1} parent=15 // pred_fallthru
        _
      // Predicated region
      $region21: #{tpu_custom_call.1} parent=15 // pred_check
        %p153 = pneg %p67
      $region22: #{tpu_custom_call.1} parent=15 // pred_check_branch
        %155 = sbr.rel (%p153) target = $region24
      $region23: #{tpu_custom_call.1} parent=15 // pred_region
        %p156 = scmp.lt.s32.totalorder %s16, 1
        %s157 = scalar_select %p156, %s16, 1
        %s158 = smul.addr %s157, 8
        %s159 = scalar_lea.vmem %s1, %s158
      $region24: #{tpu_custom_call.1} parent=15 // pred_fallthru
        _
      // Predicated region
      $region25: #{tpu_custom_call.1} parent=15 // pred_check
        %p160 = pneg %p95
      $region26: #{tpu_custom_call.1} parent=15 // pred_check_branch
        %162 = sbr.rel (%p160) target = $region28
      $region27: #{tpu_custom_call.1} parent=15 // pred_region
        %p163 = scmp.lt.s32.totalorder %s16, 1
        %s164 = scalar_select %p163, %s16, 1
        %p165 = scmp.lt.s32.totalorder %s17, 0
        %s166 = scalar_select %p165, %s17, 0
        %s167 = sadd.s32 %s166, %s164
        %s168 = smul.addr %s167, 8
        %s169 = scalar_lea.vmem %s2, %s168
      $region28: #{tpu_custom_call.1} parent=15 // pred_fallthru
        _
    $region16: #{tpu_custom_call.1} parent=5 // pred_fallthru
      _
    %p170 = scmp.le.s32.totalorder 1, %s9
    %p171 = scmp.lt.s32.totalorder %s9, 3
    %p172 = pnand %p170, %p171
    %p173 = pneg %p172
    // Predicated region
    $region29: #{tpu_custom_call.1} parent=5 // pred_check
      _
    $region30: #{tpu_custom_call.1} parent=5 // pred_check_branch
      %175 = sbr.rel (%p172) target = $region32
    $region31: #{tpu_custom_call.1} parent=5 // pred_region
      %s176 = ssub.s32 %s9, 1
      %p177 = scmp.lt.s32.totalorder %s18, 1
      %s178 = scalar_select %p177, %s18, 1
      %s179 = smul.addr %s178, 8
      %s180 = scalar_lea.vmem %s0, %s179
      %p181 = pneg %p47
      %p182 = pneg %p44
      %p183 = scmp.lt.s32.totalorder %s18, 1
      %s184 = scalar_select %p183, %s18, 1
      %s185 = smul.addr %s184, 8
      %s186 = scalar_lea.vmem %s1, %s185
      %p187 = pneg %p73
      %p188 = pneg %p70
      %p189 = scmp.lt.s32.totalorder %s18, 1
      %s190 = scalar_select %p189, %s18, 1
      %p191 = scmp.lt.s32.totalorder %s19, 0
      %s192 = scalar_select %p191, %s19, 0
      %s193 = sadd.s32 %s192, %s190
      %s194 = smul.addr %s193, 8
      %s195 = scalar_lea.vmem %s2, %s194
      %p196 = pneg %p101
      %p197 = pneg %p98
      %p198 = pneg %p127
      %p199 = pneg %p124
      %p200 = scmp.lt.s32.totalorder %s18, 1
      %s201 = scalar_select %p200, %s18, 1
      %s202 = smul.addr %s201, 8
      %s203 = scalar_lea.vmem %s3, %s202
      %p204 = scmp.lt.s32.totalorder %s18, 1
      %s205 = scalar_select %p204, %s18, 1
      %s206 = smul.addr %s205, 8
      %s207 = scalar_lea.vmem %s0, %s206
      %p208 = scmp.lt.s32.totalorder %s18, 1
      %s209 = scalar_select %p208, %s18, 1
      %s210 = smul.addr %s209, 8
      %s211 = scalar_lea.vmem %s1, %s210
      %p212 = scmp.lt.s32.totalorder %s18, 1
      %s213 = scalar_select %p212, %s18, 1
      %p214 = scmp.lt.s32.totalorder %s19, 0
      %s215 = scalar_select %p214, %s19, 0
      %s216 = sadd.s32 %s215, %s213
      %s217 = smul.addr %s216, 8
      %s218 = scalar_lea.vmem %s2, %s217
      %p219 = scmp.lt.s32.totalorder %s18, 1
      %s220 = scalar_select %p219, %s18, 1
      %s221 = smul.addr %s220, 8
      %s222 = scalar_lea.vmem %s3, %s221
      %p223 = scmp.eq.s32.totalorder %s19, 0
      // Predicated region
      $region33: #{tpu_custom_call.1} parent=31 // pred_check
        %p224 = pneg %p223
      $region34: #{tpu_custom_call.1} parent=31 // pred_check_branch
        %226 = sbr.rel (%p224) target = $region36
      $region35: #{tpu_custom_call.1} parent=31 // pred_region
        %vm227 = vcmask 7168
        %228 = vst.msk [vmem:[#allocation2] sm:$0xff] %vm227, -inf
        %229 = vst.msk [vmem:[#allocation3] sm:$0xff] %vm227, 0.0
        %230 = vst.msk [vmem:[#allocation4] sm:$0xff] %vm227, 0.0
      $region36: #{tpu_custom_call.1} parent=31 // pred_fallthru
        _
      %v231 = vld [vmem:[%s218] sm:$0xff]
      %v232 = vlaneseq
      %v233 = vand.u32 %v232, 127
      %v234 = vld [vmem:[%s207] sm:$0xff]
      %s235 = smul.u32 %s19, 128
      %v236 = vstv %s235
      %v237 = vsub.s32 %v234, %v236
      %v238 = vld [vmem:[#allocation4] sm:$0xff]
      %239 = vset.pattern.permute.xlu0 0
      %240 = vperm.xlu0 %239, %v237
      %v241 = vpop.permute.xlu0 %240
      %vm242 = vcmp.eq.s32.totalorder %v233, %v241
      %v243 = vsel %vm242, %v231, 0.0
      %244 = vadd.xlane.f32.xlu0 %v243
      %v245 = vpop.xlane.xlu0 %244
      %v246 = vadd.f32 %v238, %v245
      %vm247 = vcmask 7168
      %248 = vst.msk [vmem:[#allocation4] sm:$0xff] %vm247, %v246
      %v249 = vld [vmem:[#allocation2] sm:$0xff]
      %250 = vmax.xlane.f32.xlu0 %v231
      %v251 = vpop.xlane.xlu0 %250
      %v252 = vmax.f32 %v249, %v251
      %v253 = vld [vmem:[#allocation3] sm:$0xff]
      %v254 = vsub.f32 %v249, %v252
      %v255 = vmul.f32 %v254, 1.442695
      %v256 = vpow.pop %v255
      %v257 = vmul.f32 %v253, %v256
      %259 = vset.pattern.permute.xlu0 0
      %260 = vperm.xlu0 %259, %v252
      %v261 = vpop.permute.xlu0 %260
      %v263 = vsub.f32 %v231, %v261
      %v264 = vmul.f32 %v263, 1.442695
      %v265 = vpow.pop %v264
      %266 = vadd.xlane.f32.xlu0 %v265
      %v267 = vpop.xlane.xlu0 %266
      %v268 = vadd.f32 %v257, %v267
      %269 = vst.msk [vmem:[#allocation3] sm:$0xff] %vm247, %v268
      %270 = vst.msk [vmem:[#allocation2] sm:$0xff] %vm247, %v252
      // Predicated region
      $region37: #{tpu_custom_call.1} parent=31 // pred_check
        %p271 = pneg %p223
      $region38: #{tpu_custom_call.1} parent=31 // pred_check_branch
        %273 = sbr.rel (%p271) target = $region40
      $region39: #{tpu_custom_call.1} parent=31 // pred_region
        %v274 = vld [vmem:[#allocation2] sm:$0xff]
        %v275 = vld [vmem:[#allocation3] sm:$0xff]
        %v276 = vlog2.pop %v275
        %v277 = vmul.f32 %v276, 0.6931472
        %v278 = vadd.f32 %v274, %v277
        %v279 = vld [vmem:[#allocation4] sm:$0xff]
        %v280 = vsub.f32 %v278, %v279
        %v281 = vld [vmem:[%s211] sm:$0xff]
        %vm282 = vcmp.gt.f32.partialorder %v281, 0.0
        %v283 = vsel %vm282, %v280, 0.0
        %284 = vst.msk [vmem:[%s222] sm:$0xff] %vm247, %v283
      $region40: #{tpu_custom_call.1} parent=31 // pred_fallthru
        _
      %p285 = scmp.lt.s32.totalorder %s18, 1
      %s286 = scalar_select %p285, %s18, 1
      %s287 = smul.addr %s286, 8
      %s288 = scalar_lea.vmem %s3, %s287
      // Predicated region
      $region41: #{tpu_custom_call.1} parent=31 // pred_check
        %p289 = pneg %p124
      $region42: #{tpu_custom_call.1} parent=31 // pred_check_branch
        %291 = sbr.rel (%p289) target = $region44
      $region43: #{tpu_custom_call.1} parent=31 // pred_region
        _
      $region44: #{tpu_custom_call.1} parent=31 // pred_fallthru
        _
    $region32: #{tpu_custom_call.1} parent=5 // pred_fallthru
      _
    %p292 = scmp.le.s32.totalorder 2, %s9
    // Predicated region
    $region45: #{tpu_custom_call.1} parent=5 // pred_check
      %p293 = pneg %p292
    $region46: #{tpu_custom_call.1} parent=5 // pred_check_branch
      %295 = sbr.rel (%p293) target = $region48
    $region47: #{tpu_custom_call.1} parent=5 // pred_region
      %s296 = ssub.s32 %s9, 2
      // Predicated region
      $region49: #{tpu_custom_call.1} parent=47 // pred_check
        %p297 = pneg %p130
      $region50: #{tpu_custom_call.1} parent=47 // pred_check_branch
        %299 = sbr.rel (%p297) target = $region52
      $region51: #{tpu_custom_call.1} parent=47 // pred_region
        %p300 = scmp.lt.s32.totalorder %s20, 1
        %s301 = scalar_select %p300, %s20, 1
        %s302 = smul.addr %s301, 8
        %s303 = scalar_lea.vmem %s3, %s302
      $region52: #{tpu_custom_call.1} parent=47 // pred_fallthru
        _
    $region48: #{tpu_custom_call.1} parent=5 // pred_fallthru
      _
  $region6: #{tpu_custom_call.1} parent=0 // loop_footer
    %s13 = sadd.s32 1, %s9
  $region7: #{tpu_custom_call.1} parent=0 // loop_footer_branch
    %8 = sbr.rel target = $region3
  $region8: #{tpu_custom_call.1} parent=0 // loop_exit
    _

</llo_original>
